<compile_context>
chip_gen: v7x
topology: tpu7x:2x2x1
jax: 0.10.0
libtpu: 0.0.40
codegen_flags: <defaults>
</compile_context>

<pallas_src>
import jax
import jax.numpy as jnp
from jax import lax
from jax.experimental import pallas as pl
from jax.experimental.pallas import tpu as pltpu

NEG_BIG = -1e9          # blocked attention score
FRAME_MASK_VAL = -1e4   # value written at invalid frames (matches module semantics)
OUT_ROWS = 8            # sublane-padded output rows (n_out real rows + padding)


# ---------------------------------------------------------------------------
# One-shot sentence-side kernel: encode sentence tokens and project to K|V.
# Runs once (grid=(1,)), so none of this work is repeated per frame block.
# ---------------------------------------------------------------------------
def sentence_kv_kernel(sent_ref, ws_ref, bs_ref, wkv_ref, kval_ref):
    f32 = jnp.float32
    bf16 = jnp.bfloat16
    s = jnp.dot(sent_ref[...], ws_ref[...], preferred_element_type=f32) + bs_ref[...]
    kv = jnp.dot(s.astype(bf16), wkv_ref[...], preferred_element_type=f32)   # (BL, 2H)
    kval_ref[...] = kv.astype(bf16)


# ---------------------------------------------------------------------------
# Per-frame-block kernel: video encoder + masked cross-attention + predictor.
# ---------------------------------------------------------------------------
def frame_block_kernel(vid_ref, fcode_ref, vmask_ref,
                       k_ref, val_ref, tcode_ref,
                       wv_ref, bv_ref, wq_ref,
                       wp_t_ref, bp_ref,
                       out_ref):
    f32 = jnp.float32
    bf16 = jnp.bfloat16
    nt = (((1,), (1,)), ((), ()))   # contract last dim of lhs with last dim of rhs

    # --- video encoder: Linear, bf16 operands, f32 accumulation ---
    v = jnp.dot(vid_ref[...], wv_ref[...], preferred_element_type=f32) + bv_ref[...]  # (TB, H)
    v16 = v.astype(bf16)

    # --- interactor: frames attend to their own sample's valid sentence tokens ---
    # wq already carries the 1/sqrt(H) softmax scale (folded in f32 in the wrapper).
    q16 = jnp.dot(v16, wq_ref[...], preferred_element_type=f32).astype(bf16)          # (TB, H)
    scores = lax.dot_general(q16, k_ref[...], nt, preferred_element_type=f32)          # (TB, BL)

    # Block-diagonal + token-validity mask regenerated in-kernel (no dense bias DMA):
    # frame code = sample id (or -1 for padded frame rows); token code = sample id for
    # valid tokens, -2 for padded tokens.  Attend iff codes match.
    attend = fcode_ref[...] == tcode_ref[...]                                           # (TB, BL)
    scores = jnp.where(attend, scores, f32(NEG_BIG))

    m = jnp.max(scores, axis=-1, keepdims=True)
    e = jnp.exp(scores - m)
    denom = jnp.sum(e, axis=-1, keepdims=True)
    p = e * pl.reciprocal(denom, approx=True)                                           # (TB, BL)

    att = jnp.dot(p.astype(bf16), val_ref[...], preferred_element_type=f32)             # (TB, H)
    fused16 = (v + att).astype(bf16)                                                    # residual

    # --- predictor: logits transposed to (OUT_ROWS, TB); lane axis = frame rows ---
    logits = lax.dot_general(wp_t_ref[...], fused16, nt, preferred_element_type=f32)    # (8, TB)
    logits = logits + bp_ref[...]
    logits = jnp.where(vmask_ref[...] > 0.5, f32(FRAME_MASK_VAL), logits)

    out_ref[...] = logits.astype(out_ref.dtype)                                         # full vst


def tsgv_forward(sentence_features, sentence_masks, video_features, video_masks, params):
    """Fused BaseTSGV test-time forward. Returns per-frame logits (B, T, n_out)."""
    B, L, Hs = sentence_features.shape
    _, T, Hv = video_features.shape
    H = params["ws"].shape[1]
    n_out = params["wp"].shape[1]

    BL = B * L
    BT = B * T
    TB = 128                                   # frame rows per grid step (lane-dense width)
    BT_pad = ((BT + TB - 1) // TB) * TB
    num_blocks = BT_pad // TB

    f32 = jnp.float32
    bf16 = jnp.bfloat16
    i32 = jnp.int32

    # ---------------- sentence side (hoisted, computed once) ----------------
    sent_flat = sentence_features.reshape(BL, Hs).astype(bf16)
    ws = params["ws"].astype(bf16)
    bs = params["bs"].astype(f32)
    wkv = jnp.concatenate([params["wk"], params["wval"]], axis=1).astype(bf16)   # (H, 2H)

    kval = pl.pallas_call(
        sentence_kv_kernel,
        out_shape=jax.ShapeDtypeStruct((BL, 2 * H), bf16),
        grid=(1,),
        in_specs=[
            pl.BlockSpec((BL, Hs), lambda i: (0, 0)),
            pl.BlockSpec((Hs, H), lambda i: (0, 0)),
            pl.BlockSpec((1, H), lambda i: (0, 0)),
            pl.BlockSpec((H, 2 * H), lambda i: (0, 0)),
        ],
        out_specs=pl.BlockSpec((BL, 2 * H), lambda i: (0, 0)),
    )(sent_flat, ws, bs, wkv)

    k16 = kval[:, :H]          # (BL, H) bf16
    val16 = kval[:, H:]        # (BL, H) bf16

    # ---------------- frame side inputs ----------------
    vid_flat = jnp.pad(video_features.reshape(BT, Hv),
                       ((0, BT_pad - BT), (0, 0))).astype(bf16)

    # frame->sample code (-1 on padded frame rows) and token code (-2 on invalid tokens)
    sample_of_frame = jnp.repeat(jnp.arange(B, dtype=i32), T)                     # (BT,)
    fcode = jnp.pad(sample_of_frame, (0, BT_pad - BT), constant_values=-1)
    fcode = fcode.reshape(BT_pad, 1)
    sample_of_token = jnp.repeat(jnp.arange(B, dtype=i32), L)                     # (BL,)
    token_valid = sentence_masks.reshape(BL) < 0.5
    tcode = jnp.where(token_valid, sample_of_token, -2).astype(i32).reshape(1, BL)

    # frame-invalid mask in transposed (1, BT_pad) layout; padding marked invalid
    vmask = jnp.pad(video_masks.astype(f32).reshape(1, BT),
                    ((0, 0), (0, BT_pad - BT)), constant_values=1.0)

    # Weights: bf16 MXU operands, f32 biases.  Softmax scale folded into wq (f32 first).
    wv = params["wv"].astype(bf16)
    bv = params["bv"].astype(f32)
    scale = 1.0 / jnp.sqrt(f32(H))
    wq = (params["wq"] * scale).astype(bf16)

    # Predictor weight pre-transposed and sublane-padded to OUT_ROWS rows.
    wp_pad = jnp.zeros((H, OUT_ROWS), f32).at[:, :n_out].set(params["wp"])
    wp_t = wp_pad.T.astype(bf16)                                                  # (8, H)
    bp = jnp.zeros((OUT_ROWS, 1), f32).at[:n_out, 0].set(params["bp"].reshape(n_out))

    shared = lambda i: (0, 0)

    grid_spec = pltpu.PrefetchScalarGridSpec(
        num_scalar_prefetch=0,
        grid=(num_blocks,),
        in_specs=[
            pl.BlockSpec((TB, Hv), lambda i: (i, 0)),    # frame-row block
            pl.BlockSpec((TB, 1), lambda i: (i, 0)),     # frame sample code block
            pl.BlockSpec((1, TB), lambda i: (0, i)),     # frame-invalid mask block
            pl.BlockSpec((BL, H), shared),               # K (precomputed, bf16)
            pl.BlockSpec((BL, H), shared),               # V (precomputed, bf16)
            pl.BlockSpec((1, BL), shared),               # token code
            pl.BlockSpec((Hv, H), shared),               # wv
            pl.BlockSpec((1, H), shared),                # bv
            pl.BlockSpec((H, H), shared),                # wq (scale folded)
            pl.BlockSpec((OUT_ROWS, H), shared),         # wp (pre-transposed, padded)
            pl.BlockSpec((OUT_ROWS, 1), shared),         # bp (padded)
        ],
        out_specs=pl.BlockSpec((OUT_ROWS, TB), lambda i: (0, i)),
    )

    out_t = pl.pallas_call(
        frame_block_kernel,
        out_shape=jax.ShapeDtypeStruct((OUT_ROWS, BT_pad), f32),
        grid_spec=grid_spec,
        compiler_params=pltpu.CompilerParams(
            dimension_semantics=("parallel",),       # frame-row blocks are independent
            # TODO(synk): when TB is raised for real T, raise this on v6e (128 MiB VMEM)
            # and keep the live set <= ~48 MiB on v7x (64 MiB/TC); constant-index-map
            # inputs could additionally use pipeline_mode=pl.Buffered(1).
            vmem_limit_bytes=32 * 1024 * 1024,
        ),
    )(vid_flat, fcode, vmask, k16, val16, tcode, wv, bv, wq, wp_t, bp)

    # (OUT_ROWS, BT_pad) -> real rows, drop padding -> (B, T, n_out)
    return out_t[:n_out, :BT].T.reshape(B, T, n_out)


def tsgv_forward_ref(sentence_features, sentence_masks, video_features, video_masks, params):
    """Pure-JAX f32 reference for correctness checking."""
    s = jnp.einsum("blh,hd->bld", sentence_features, params["ws"]) + params["bs"]
    v = jnp.einsum("bth,hd->btd", video_features, params["wv"]) + params["bv"]
    q = jnp.einsum("btd,de->bte", v, params["wq"])
    k = jnp.einsum("bld,de->ble", s, params["wk"])
    val = jnp.einsum("bld,de->ble", s, params["wval"])
    scale = 1.0 / jnp.sqrt(jnp.float32(q.shape[-1]))
    scores = jnp.einsum("bte,ble->btl", q, k) * scale
    scores = jnp.where(sentence_masks[:, None, :] > 0.5, NEG_BIG, scores)
    p = jax.nn.softmax(scores, axis=-1)
    att = jnp.einsum("btl,ble->bte", p, val)
    fused = v + att
    logits = jnp.einsum("bte,eo->bto", fused, params["wp"]) + params["bp"]
    logits = jnp.where(video_masks[:, :, None] > 0.5, FRAME_MASK_VAL, logits)
    return logits


def make_params(key, Hs, Hv, H, n_out=2):
    ks = jax.random.split(key, 8)
    return {
        "ws": jax.random.normal(ks[0], (Hs, H), jnp.float32) * 0.1,
        "bs": jax.random.normal(ks[1], (1, H), jnp.float32) * 0.01,
        "wv": jax.random.normal(ks[2], (Hv, H), jnp.float32) * 0.1,
        "bv": jax.random.normal(ks[3], (1, H), jnp.float32) * 0.01,
        "wq": jax.random.normal(ks[4], (H, H), jnp.float32) * 0.1,
        "wk": jax.random.normal(ks[5], (H, H), jnp.float32) * 0.1,
        "wval": jax.random.normal(ks[6], (H, H), jnp.float32) * 0.1,
        "wp": jax.random.normal(ks[7], (H, n_out), jnp.float32) * 0.1,
        "bp": jnp.zeros((1, n_out), jnp.float32),
    }


if __name__ == "__main__":
    # Small shapes consistent with the module's (B, L, h_s) / (B, T, h) inputs.
    B, L, Hs = 2, 8, 32      # sentences
    T, Hv = 16, 32           # video frames
    H = 32                   # shared hidden dim
    n_out = 2                # start / end logits

    key = jax.random.PRNGKey(0)
    k_sent, k_vid, k_par = jax.random.split(key, 3)

    sentence_features = jax.random.normal(k_sent, (B, L, Hs), jnp.float32)
    video_features = jax.random.normal(k_vid, (B, T, Hv), jnp.float32)

    # Masks: True (1.0) = invalid padded position (PyTorch convention).
    sent_len = jnp.array([6, 8])
    vid_len = jnp.array([16, 12])
    sentence_masks = (jnp.arange(L)[None, :] >= sent_len[:, None]).astype(jnp.float32)
    video_masks = (jnp.arange(T)[None, :] >= vid_len[:, None]).astype(jnp.float32)

    params = make_params(k_par, Hs, Hv, H, n_out)

    out = tsgv_forward(sentence_features, sentence_masks, video_features, video_masks, params)
    out = jax.block_until_ready(out)

    ref = tsgv_forward_ref(sentence_features, sentence_masks, video_features, video_masks, params)
    assert out.shape == (B, T, n_out)
    # Kernel runs matmuls in bf16 (f32 accumulation) + approx reciprocal (error is
    # correlated per softmax row); reference is full f32 -> loose tolerance.
    assert jnp.allclose(out, ref, atol=5e-2, rtol=5e-2), "Pallas kernel mismatch vs reference"

    print("KERNEL_OK")
</pallas_src>

<mosaic_0001>
module attributes {stable_mosaic.version = 11 : i64} {
  func.func @sentence_kv_kernel(%arg0: i32, %arg1: memref<16x32xbf16, #tpu.memory_space<vmem>>, %arg2: memref<32x32xbf16, #tpu.memory_space<vmem>>, %arg3: memref<1x32xf32, #tpu.memory_space<vmem>>, %arg4: memref<32x64xbf16, #tpu.memory_space<vmem>>, %arg5: memref<16x64xbf16, #tpu.memory_space<vmem>>) attributes {dimension_semantics = [#tpu.dimension_semantics<arbitrary>], iteration_bounds = array<i64: 1>, scalar_prefetch = 0 : i64, scratch_operands = 0 : i64, tpu.core_type = #tpu.core_type<tc>, window_params = [{pipeline_mode = #tpu.pipeline_mode<synchronous>, transform_indices = @transform_0, window_bounds = array<i64: 16, 32>}, {pipeline_mode = #tpu.pipeline_mode<synchronous>, transform_indices = @transform_1, window_bounds = array<i64: 32, 32>}, {pipeline_mode = #tpu.pipeline_mode<synchronous>, transform_indices = @transform_2, window_bounds = array<i64: 1, 32>}, {pipeline_mode = #tpu.pipeline_mode<synchronous>, transform_indices = @transform_3, window_bounds = array<i64: 32, 64>}, {pipeline_mode = #tpu.pipeline_mode<synchronous>, transform_indices = @transform_4, window_bounds = array<i64: 16, 64>}]} {
    %c0 = arith.constant 0 : index
    %c0_0 = arith.constant 0 : index
    %0 = vector.load %arg1[%c0, %c0_0] : memref<16x32xbf16, #tpu.memory_space<vmem>>, vector<16x32xbf16>
    %c0_1 = arith.constant 0 : index
    %c0_2 = arith.constant 0 : index
    %1 = vector.load %arg2[%c0_1, %c0_2] : memref<32x32xbf16, #tpu.memory_space<vmem>>, vector<32x32xbf16>
    %cst = arith.constant dense<0.000000e+00> : vector<16x32xf32>
    %2 = tpu.matmul %0, %1, %cst {dimension_numbers = #tpu.dot_dimension_numbers<[1], [0], [0], [1], [0, 0, 1, 1], [], []>} : vector<16x32xbf16>, vector<32x32xbf16>, vector<16x32xf32> -> vector<16x32xf32>
    %c0_3 = arith.constant 0 : index
    %c0_4 = arith.constant 0 : index
    %3 = vector.load %arg3[%c0_3, %c0_4] : memref<1x32xf32, #tpu.memory_space<vmem>>, vector<1x32xf32>
    %4 = vector.broadcast %3 : vector<1x32xf32> to vector<16x32xf32>
    %5 = arith.addf %2, %4 : vector<16x32xf32>
    %6 = arith.truncf %5 : vector<16x32xf32> to vector<16x32xbf16>
    %c0_5 = arith.constant 0 : index
    %c0_6 = arith.constant 0 : index
    %7 = vector.load %arg4[%c0_5, %c0_6] : memref<32x64xbf16, #tpu.memory_space<vmem>>, vector<32x64xbf16>
    %cst_7 = arith.constant dense<0.000000e+00> : vector<16x64xf32>
    %8 = tpu.matmul %6, %7, %cst_7 {dimension_numbers = #tpu.dot_dimension_numbers<[1], [0], [0], [1], [0, 0, 1, 1], [], []>} : vector<16x32xbf16>, vector<32x64xbf16>, vector<16x64xf32> -> vector<16x64xf32>
    %9 = arith.truncf %8 : vector<16x64xf32> to vector<16x64xbf16>
    %c0_8 = arith.constant 0 : index
    %c0_9 = arith.constant 0 : index
    %10 = vector.load %arg5[%c0_8, %c0_9] : memref<16x64xbf16, #tpu.memory_space<vmem>>, vector<16x64xbf16>
    tpu.vector_store %arg5[%c0_8, %c0_9], %9 {strides = array<i32>} : memref<16x64xbf16, #tpu.memory_space<vmem>>, vector<16x64xbf16>,
    return
  }
  func.func @transform_0(%arg0: i32) -> (i32, i32) {
    %c0_i32 = arith.constant 0 : i32
    %c0_i32_0 = arith.constant 0 : i32
    %c0_i32_1 = arith.constant 0 : i32
    return %c0_i32, %c0_i32_0 : i32, i32
  }
  func.func @transform_1(%arg0: i32) -> (i32, i32) {
    %c0_i32 = arith.constant 0 : i32
    %c0_i32_0 = arith.constant 0 : i32
    %c0_i32_1 = arith.constant 0 : i32
    return %c0_i32, %c0_i32_0 : i32, i32
  }
  func.func @transform_2(%arg0: i32) -> (i32, i32) {
    %c0_i32 = arith.constant 0 : i32
    %c0_i32_0 = arith.constant 0 : i32
    %c0_i32_1 = arith.constant 0 : i32
    return %c0_i32, %c0_i32_0 : i32, i32
  }
  func.func @transform_3(%arg0: i32) -> (i32, i32) {
    %c0_i32 = arith.constant 0 : i32
    %c0_i32_0 = arith.constant 0 : i32
    %c0_i32_1 = arith.constant 0 : i32
    return %c0_i32, %c0_i32_0 : i32, i32
  }
  func.func @transform_4(%arg0: i32) -> (i32, i32) {
    %c0_i32 = arith.constant 0 : i32
    %c0_i32_0 = arith.constant 0 : i32
    %c0_i32_1 = arith.constant 0 : i32
    return %c0_i32, %c0_i32_0 : i32, i32
  }
}

</mosaic_0001>

<llo_original>
// kernel: tpu_custom_call.1
$region0: #{tpu_custom_call.1}
  #allocation0 [shape = 'u32[]', space=smem, size = 0x4, offset = 0x4, fixed_abs, tag = 'smem constant byte address 0x4 - core index']
  #allocation1 [shape = 'u32[144,128]{1,0:T(1,128)}', space=vmem, size = 0x12000, scoped, tag = 'internal scratch']
  %s0 = inlined_call_operand.hbm [shape: bf16[16,32], index: 0, kind: input, shape index: {}]
  %s1 = inlined_call_operand.hbm [shape: bf16[32,32], index: 1, kind: input, shape index: {}]
  %s2 = inlined_call_operand.vmem [shape: f32[1,32], index: 2, kind: input, shape index: {}]
  %s3 = inlined_call_operand.hbm [shape: bf16[32,64], index: 3, kind: input, shape index: {}]
  %s4 = inlined_call_operand.hbm [shape: bf16[16,64], index: 4, kind: output, shape index: {}]
  %s5 = sld [smem:[#allocation0]]
  $region38: #{tpu_custom_call.1} parent=0
    _
  %s7 = ssub.s32 1, %s5
  %s8 = scalar_select 0, %s7, %s5
  $region1: #{tpu_custom_call.1} parent=0
    #allocation2 [shape = 'u8[4096]{0}', space=vmem, size = 0x1000, scoped, tag = 'input window, operand 0, single buffered']
    #allocation3 [shape = 's32[1]{0}', space=sflag, size = 0x4, scoped, tag = 'scoped memory for tpu_custom_call.1']
    #allocation4 [shape = 's32[1]{0}', space=sflag, size = 0x4, scoped, tag = 'scoped memory for tpu_custom_call.1']
    #allocation5 [shape = 'u8[8192]{0}', space=vmem, size = 0x2000, scoped, tag = 'input window, operand 1, single buffered']
    #allocation6 [shape = 's32[1]{0}', space=sflag, size = 0x4, scoped, tag = 'scoped memory for tpu_custom_call.1']
    #allocation7 [shape = 'u8[8192]{0}', space=vmem, size = 0x2000, scoped, tag = 'input window, operand 3, single buffered']
    #allocation8 [shape = 'u8[4096]{0}', space=vmem, size = 0x1000, scoped, tag = 'output window, operand 0, single buffered']
    %9 = vsyncpa [#allocation3], 0
    %10 = vsyncpa [#allocation6], 0
    %11 = vsyncpa [#allocation4], 0
    // Predicated region
    $region2: #{tpu_custom_call.1} parent=1 // pred_check
      _
    $region3: #{tpu_custom_call.1} parent=1 // pred_check_branch
      %13 = sbr.rel (0) target = $region5
    $region4: #{tpu_custom_call.1} parent=1 // pred_region
      %s15 = ssub.s32 128, 128
      %16 = vsyncadd [#allocation3], %s15
      %s17 = sshll.u32 [#allocation2], 4
      %s18 = int_to_ptr.vmem [resolvable:$true] %s17
      %23 = dma.hbm_to_vmem [thread:$0]  %s0, 128, %s18, [#allocation3], 64, 64, 4
    $region5: #{tpu_custom_call.1} parent=1 // pred_fallthru
      _
    // Predicated region
    $region6: #{tpu_custom_call.1} parent=1 // pred_check
      _
    $region7: #{tpu_custom_call.1} parent=1 // pred_check_branch
      %25 = sbr.rel (0) target = $region9
    $region8: #{tpu_custom_call.1} parent=1 // pred_region
      %s27 = ssub.s32 256, 256
      %28 = vsyncadd [#allocation6], %s27
      %s29 = sshll.u32 [#allocation5], 4
      %s30 = int_to_ptr.vmem [resolvable:$true] %s29
      %35 = dma.hbm_to_vmem [thread:$0]  %s1, 256, %s30, [#allocation6], 64, 64, 4
    $region9: #{tpu_custom_call.1} parent=1 // pred_fallthru
      _
    // Predicated region
    $region10: #{tpu_custom_call.1} parent=1 // pred_check
      _
    $region11: #{tpu_custom_call.1} parent=1 // pred_check_branch
      %37 = sbr.rel (0) target = $region13
    $region12: #{tpu_custom_call.1} parent=1 // pred_region
      _
    $region13: #{tpu_custom_call.1} parent=1 // pred_fallthru
      _
    // Predicated region
    $region14: #{tpu_custom_call.1} parent=1 // pred_check
      _
    $region15: #{tpu_custom_call.1} parent=1 // pred_check_branch
      %39 = sbr.rel (0) target = $region17
    $region16: #{tpu_custom_call.1} parent=1 // pred_region
      %s41 = ssub.s32 256, 256
      %42 = vsyncadd [#allocation6], %s41
      %s43 = sshll.u32 [#allocation7], 4
      %s44 = int_to_ptr.vmem [resolvable:$true] %s43
      %49 = dma.hbm_to_vmem [thread:$0]  %s3, 256, %s44, [#allocation6], 64, 64, 4
    $region17: #{tpu_custom_call.1} parent=1 // pred_fallthru
      _
    // Predicated region
    $region18: #{tpu_custom_call.1} parent=1 // pred_check
      _
    $region19: #{tpu_custom_call.1} parent=1 // pred_check_branch
      %51 = sbr.rel (0) target = $region21
    $region20: #{tpu_custom_call.1} parent=1 // pred_region
      %52 = dma.done [#allocation3], 128
    $region21: #{tpu_custom_call.1} parent=1 // pred_fallthru
      _
    // Predicated region
    $region22: #{tpu_custom_call.1} parent=1 // pred_check
      _
    $region23: #{tpu_custom_call.1} parent=1 // pred_check_branch
      %54 = sbr.rel (0) target = $region25
    $region24: #{tpu_custom_call.1} parent=1 // pred_region
      %55 = dma.done [#allocation6], 256
    $region25: #{tpu_custom_call.1} parent=1 // pred_fallthru
      _
    // Predicated region
    $region26: #{tpu_custom_call.1} parent=1 // pred_check
      _
    $region27: #{tpu_custom_call.1} parent=1 // pred_check_branch
      %57 = sbr.rel (0) target = $region29
    $region28: #{tpu_custom_call.1} parent=1 // pred_region
      %58 = dma.done [#allocation6], 256
    $region29: #{tpu_custom_call.1} parent=1 // pred_fallthru
      _
    %v60 = vld [vmem:[#allocation2] sm:$0xf]
    %v61 = vld [vmem:[#allocation2 + $0x4] sm:$0xf]
    %v62 = vld [vmem:[#allocation5] sm:$0xf]
    %v63 = vld [vmem:[#allocation5 + $0x4] sm:$0xf]
    %v64 = vld [vmem:[#allocation5 + $0x8] sm:$0xf]
    %v65 = vld [vmem:[#allocation5 + $0xc] sm:$0xf]
    %v66 = vld [vmem:[%s2] sm:$0x1]
    %v68 = vlaneseq
    %v69 = vshrl.u32 %v68, 7
    %v70 = vsub.s32 0, %v69
    %v71 = vrot.slane %v66, %v70
    %v75 = vunpack.c.l.b16 %v60
    %v76 = vunpack.c.l.b16 %v61
    %v77 = vpack.c.b16 %v76, %v75
    %v82 = vunpack.c.l.b16 %v62
    %v83 = vunpack.c.l.b16 %v63
    %v84 = vunpack.c.l.b16 %v64
    %v85 = vunpack.c.l.b16 %v65
    %v86 = vpack.c.b16 %v83, %v82
    %v87 = vpack.c.b16 %v85, %v84
    %vm90 = vcmask 261120
    %v92 = vsel %vm90, %v77, 0
    %94 = vmatprep.subr.bf16.mxu0 0
    %95 = vmatpush1.bf16.msra.mxu0 %v86
    %96 = vmatprep.subr.bf16.mxu0 0
    %97 = vmatpush1.bf16.msra.mxu0 %v87
    %98 = vmatprep.subr.bf16.mxu0 0
    %99 = vmatpush1.bf16.msra.mxu0 0
    %100 = vmatprep.subr.bf16.mxu0 0
    %101 = vmatpush1.bf16.msra.mxu0 0
    %102 = vmatprep.subr.bf16.mxu0 0
    %103 = vmatpush1.bf16.msra.mxu0 0
    %104 = vmatprep.subr.bf16.mxu0 0
    %105 = vmatpush1.bf16.msra.mxu0 0
    %106 = vmatprep.subr.bf16.mxu0 0
    %107 = vmatpush1.bf16.msra.mxu0 0
    %108 = vmatprep.subr.bf16.mxu0 0
    %109 = vmatpush1.bf16.msra.mxu0 0
    %110 = vmatprep.subr.bf16.mxu0 0
    %111 = vmatpush1.bf16.msra.mxu0 0
    %112 = vmatprep.subr.bf16.mxu0 0
    %113 = vmatpush1.bf16.msra.mxu0 0
    %114 = vmatprep.subr.bf16.mxu0 0
    %115 = vmatpush1.bf16.msra.mxu0 0
    %116 = vmatprep.subr.bf16.mxu0 0
    %117 = vmatpush1.bf16.msra.mxu0 0
    %118 = vmatprep.subr.bf16.mxu0 0
    %119 = vmatpush1.bf16.msra.mxu0 0
    %120 = vmatprep.subr.bf16.mxu0 0
    %121 = vmatpush1.bf16.msra.mxu0 0
    %122 = vmatprep.subr.bf16.mxu0 0
    %123 = vmatpush1.bf16.msra.mxu0 0
    %124 = vmatprep.subr.bf16.mxu0 0
    %125 = vmatpush1.bf16.msra.mxu0 0
    %126 = vmatprep.mubr.bf16.mxu0 0
    %127 = vmatmul.mubr.bf16.gmra.mrb[0].mxu0 %v92
    %v128 = vpop.f32.mrb[0].mxu0
    %v129 = vadd.f32 %v71, %v128
    %v130 = vpop.f32.mrb[0].mxu0
    %v131 = vpop.f32.mrb[0].mxu0
    %v132 = vadd.f32 %v71, %v131
    %v133 = vpop.f32.mrb[0].mxu0
    %134 = vdwg.mxu0
    %v135 = vpack.c.bf16 %v132, %v129
    %v136 = vld [vmem:[#allocation7] sm:$0xf]
    %v137 = vld [vmem:[#allocation7 + $0x4] sm:$0xf]
    %v138 = vld [vmem:[#allocation7 + $0x8] sm:$0xf]
    %v139 = vld [vmem:[#allocation7 + $0xc] sm:$0xf]
    %v144 = vunpack.c.l.b16 %v136
    %v145 = vunpack.c.l.b16 %v137
    %v146 = vunpack.c.l.b16 %v138
    %v147 = vunpack.c.l.b16 %v139
    %v148 = vpack.c.b16 %v145, %v144
    %v149 = vpack.c.b16 %v147, %v146
    %v153 = vsel %vm90, %v135, 0
    %155 = vmatprep.subr.bf16.mxu0 0
    %156 = vmatpush1.bf16.msra.mxu0 %v148
    %157 = vmatprep.subr.bf16.mxu0 0
    %158 = vmatpush1.bf16.msra.mxu0 %v149
    %159 = vmatprep.subr.bf16.mxu0 0
    %160 = vmatpush1.bf16.msra.mxu0 0
    %161 = vmatprep.subr.bf16.mxu0 0
    %162 = vmatpush1.bf16.msra.mxu0 0
    %163 = vmatprep.subr.bf16.mxu0 0
    %164 = vmatpush1.bf16.msra.mxu0 0
    %165 = vmatprep.subr.bf16.mxu0 0
    %166 = vmatpush1.bf16.msra.mxu0 0
    %167 = vmatprep.subr.bf16.mxu0 0
    %168 = vmatpush1.bf16.msra.mxu0 0
    %169 = vmatprep.subr.bf16.mxu0 0
    %170 = vmatpush1.bf16.msra.mxu0 0
    %171 = vmatprep.subr.bf16.mxu0 0
    %172 = vmatpush1.bf16.msra.mxu0 0
    %173 = vmatprep.subr.bf16.mxu0 0
    %174 = vmatpush1.bf16.msra.mxu0 0
    %175 = vmatprep.subr.bf16.mxu0 0
    %176 = vmatpush1.bf16.msra.mxu0 0
    %177 = vmatprep.subr.bf16.mxu0 0
    %178 = vmatpush1.bf16.msra.mxu0 0
    %179 = vmatprep.subr.bf16.mxu0 0
    %180 = vmatpush1.bf16.msra.mxu0 0
    %181 = vmatprep.subr.bf16.mxu0 0
    %182 = vmatpush1.bf16.msra.mxu0 0
    %183 = vmatprep.subr.bf16.mxu0 0
    %184 = vmatpush1.bf16.msra.mxu0 0
    %185 = vmatprep.subr.bf16.mxu0 0
    %186 = vmatpush1.bf16.msra.mxu0 0
    %187 = vmatprep.mubr.bf16.mxu0 0
    %188 = vmatmul.mubr.bf16.gmra.mrb[0].mxu0 %v153
    %v189 = vpop.f32.mrb[0].mxu0
    %v190 = vadd.f32 0.0, %v189
    %v191 = vpop.f32.mrb[0].mxu0
    %v192 = vpop.f32.mrb[0].mxu0
    %v193 = vadd.f32 0.0, %v192
    %v194 = vpop.f32.mrb[0].mxu0
    %195 = vdwg.mxu0
    %v196 = vpack.c.bf16 %v193, %v190
    %v198 = vunpack.c.l.b16 %v196
    %v199 = vunpack.c.h.b16 %v196
    %v200 = vpack.c.b16 %v198, %v198
    %v201 = vpack.c.b16 %v199, %v199
    %vm204 = vcmask 519168
    %205 = vst.msk [vmem:[#allocation8] sm:$0xf] %vm204, %v200
    %206 = vst.msk [vmem:[#allocation8 + $0x4] sm:$0xf] %vm204, %v201
    // Predicated region
    $region30: #{tpu_custom_call.1} parent=1 // pred_check
      _
    $region31: #{tpu_custom_call.1} parent=1 // pred_check_branch
      %208 = sbr.rel (0) target = $region33
    $region32: #{tpu_custom_call.1} parent=1 // pred_region
      %s210 = ssub.s32 128, 128
      %211 = vsyncadd [#allocation4], %s210
      %s212 = sshll.u32 [#allocation8], 4
      %s213 = int_to_ptr.vmem [resolvable:$true] %s212
      %218 = dma.vmem_to_hbm [thread:$0]  %s213, 128, %s4, [#allocation4], 64, 64, 4
    $region33: #{tpu_custom_call.1} parent=1 // pred_fallthru
      _
    // Predicated region
    $region34: #{tpu_custom_call.1} parent=1 // pred_check
      _
    $region35: #{tpu_custom_call.1} parent=1 // pred_check_branch
      %220 = sbr.rel (0) target = $region37
    $region36: #{tpu_custom_call.1} parent=1 // pred_region
      %221 = dma.done [#allocation4], 128
    $region37: #{tpu_custom_call.1} parent=1 // pred_fallthru
      _
    %222 = vsyncpa [#allocation3], 1
    %223 = vsyncpa [#allocation6], 1
    %224 = vsyncpa [#allocation4], 1

</llo_original>
